<compile_context>
chip_gen: v5e
topology: v5e:2x2
jax: 0.10.0
libtpu: 0.0.40
codegen_flags: <defaults>
</compile_context>

<pallas_src>
import functools

import jax
import jax.numpy as jnp
from jax.experimental import pallas as pl
from jax.experimental.pallas import tpu as pltpu


# -----------------------------------------------------------------------------
# Fused kernel: packed 4-head MLP + reparameterization + gaussian KLD
# -----------------------------------------------------------------------------
def _act_latent_kernel(act_ref, w_ref, b_ref, z_ref, kld_ref, *,
                       hidden, din, wide, train):
    """act_ref : (N, din + hidden)      f32   [x_p | x | act_emb | eps]
       w_ref   : (din + 2*wide, wide)   bf16  rows = [W1 ; W2 ; W3 (lane-padded)]
       b_ref   : (3, wide)              f32   rows = [b1 ; b2 ; b3 (lane-padded)]
       z_ref   : (N, hidden)            f32
       kld_ref : (1, 1)                 f32
    """
    h4 = 4 * hidden                                      # packed head output lanes

    # Activations stay f32 in VMEM; matmul operands are cast to bf16.
    xin = act_ref[:, 0:din].astype(jnp.bfloat16)         # [x_p | x | act_emb]
    eps = act_ref[:, din:din + hidden]                   # f32 noise

    # Static, tile-aligned slices of the two packed parameter slabs (no DMAs).
    w1 = w_ref[0:din, :]
    w2 = w_ref[din:din + wide, :]
    w3 = w_ref[din + wide:din + 2 * wide, 0:h4]
    b1 = b_ref[0:1, :]
    b2 = b_ref[1:2, :]
    b3 = b_ref[2:3, 0:h4]

    # Packed 3-layer MLP for all four heads: 3 MXU issues total, f32 accumulate.
    h = jnp.dot(xin, w1, preferred_element_type=jnp.float32) + b1
    h = jnp.maximum(h, 0.0).astype(jnp.bfloat16)
    h = jnp.dot(h, w2, preferred_element_type=jnp.float32) + b2
    h = jnp.maximum(h, 0.0).astype(jnp.bfloat16)
    out = jnp.dot(h, w3, preferred_element_type=jnp.float32) + b3    # (N, 4H)

    # Output lanes: [mean | log_var | mean_p | log_var_p].
    mean      = out[:, 0 * hidden:1 * hidden]
    log_var   = out[:, 1 * hidden:2 * hidden]
    mean_p    = out[:, 2 * hidden:3 * hidden]
    log_var_p = out[:, 3 * hidden:4 * hidden]

    # Reparameterization: sample from the p head in training, q head otherwise
    # (matches the PyTorch forward exactly; `train` is a static Python bool).
    if train:
        z = eps * jnp.exp(0.5 * log_var_p) + mean_p
    else:
        z = eps * jnp.exp(0.5 * log_var) + mean
    z_ref[...] = z.astype(z_ref.dtype)

    # gaussian_kld(mean_p, log_var_p, mean, log_var): per-row sum over the
    # feature dim, then mean over the B*T rows (single -0.5/N scale).
    d = log_var_p - log_var
    term = 1.0 + d - (mean - mean_p) ** 2 * jnp.exp(-log_var) - jnp.exp(d)
    n_rows = term.shape[0]
    row_sum = jnp.sum(term, axis=-1, keepdims=True)                  # (N, 1)
    kld_ref[...] = jnp.sum(row_sum, axis=0, keepdims=True) * (-0.5 / n_rows)


# -----------------------------------------------------------------------------
# Forward wrapper (reshape/concat glue only; all math inside the kernel)
# -----------------------------------------------------------------------------
def act_latent_forward(packed, x, x_p, act_emb, eps, train=True):
    """Returns (kld_loss, z) like ActLatent.forward.  `eps` is the
    torch.randn(x.size()) noise, passed explicitly for determinism."""
    B, T, H = x.shape
    act_dim = act_emb.shape[-1]
    n = B * T
    din = 2 * H + act_dim

    w_slab, b_slab = packed
    wide = w_slab.shape[1]

    # Single activation slab: [x_p | x | act_emb | eps]; the first `din` lanes
    # match the torch.cat((x_p, x, act_emb), -1) layout used by the p heads.
    acts = jnp.concatenate(
        [x_p.reshape(n, H), x.reshape(n, H),
         act_emb.reshape(n, act_dim), eps.reshape(n, H)], axis=1)

    flops = 2 * n * (din * wide + wide * wide + wide * 4 * H)
    bytes_accessed = (acts.size * 4 + w_slab.size * 2 + b_slab.size * 4
                      + n * H * 4 + 4)

    vmem = pl.BlockSpec(memory_space=pltpu.MemorySpace.VMEM)
    # Grid-less: the whole working set (<0.4 MiB) lives in VMEM.  If B*T grows
    # to production size, add a "parallel" row grid (tile M, lane-dense z
    # output, weight index_map=lambda i: (0, 0)) so v7x's 2nd TensorCore is
    # used and the ~0.35us/step overhead amortizes.
    z2, kld = pl.pallas_call(
        functools.partial(_act_latent_kernel,
                          hidden=H, din=din, wide=wide, train=train),
        out_shape=(jax.ShapeDtypeStruct((n, H), jnp.float32),
                   jax.ShapeDtypeStruct((1, 1), jnp.float32)),
        in_specs=[vmem, vmem, vmem],
        out_specs=(vmem, vmem),
        cost_estimate=pl.CostEstimate(flops=flops, transcendentals=3 * n * H,
                                      bytes_accessed=bytes_accessed),
    )(acts, w_slab, b_slab)
    return kld[0, 0], z2.reshape(B, T, H)


# -----------------------------------------------------------------------------
# Synthetic parameter init (shapes from __init__) + one-time host-side packing
# -----------------------------------------------------------------------------
def init_pff_params(key, d_in, d_filter, d_out):
    """Synthetic params for PositionwiseFeedForward(layer_config='lll')."""
    ks = jax.random.split(key, 3)

    def lin(k, din, dout):
        scale = 1.0 / jnp.sqrt(jnp.float32(din))
        w = jax.random.normal(k, (din, dout), jnp.float32) * scale
        b = jnp.zeros((1, dout), jnp.float32)
        return w, b

    w1, b1 = lin(ks[0], d_in, d_filter)
    w2, b2 = lin(ks[1], d_filter, d_filter)
    w3, b3 = lin(ks[2], d_filter, d_out)
    return (w1, b1, w2, b2, w3, b3)


def _block_diag(blocks):
    rows = sum(b.shape[0] for b in blocks)
    cols = sum(b.shape[1] for b in blocks)
    out = jnp.zeros((rows, cols), jnp.float32)
    r = c = 0
    for b in blocks:
        out = out.at[r:r + b.shape[0], c:c + b.shape[1]].set(b)
        r += b.shape[0]
        c += b.shape[1]
    return out


def pack_act_latent_params(params, hidden, act_dim, filt):
    """Pack the four PFF heads into (w_slab, b_slab).

    w_slab : bf16 (din + 2*wide, wide)  rows = [W1 ; W2 ; W3 zero-padded lanes]
    b_slab : f32  (3, wide)             rows = [b1 ; b2 ; b3 zero-padded lanes]
    wide = 4*filt; packed output lanes = [mean | log_var | mean_p | log_var_p].
    The q heads (mean/var) only read the `x` rows of [x_p | x | act_emb], so
    their W1 rows for x_p / act_emb are zero.  Section row-starts (din and
    din+wide) are multiples of 16 for this config, keeping kernel slices
    tile-aligned in the bf16 layout.
    """
    din = 2 * hidden + act_dim
    wide = 4 * filt
    h4 = 4 * hidden
    assert wide >= h4
    order = ("mean", "var", "mean_p", "var_p")

    w1_cols, b1_cols, b2_cols, b3_cols = [], [], [], []
    for name in order:
        w1, b1, _, b2, _, b3 = params[name]
        if name in ("mean", "var"):                       # input = x only
            w1 = jnp.concatenate(
                [jnp.zeros((hidden, filt), jnp.float32), w1,
                 jnp.zeros((act_dim, filt), jnp.float32)], axis=0)
        w1_cols.append(w1)
        b1_cols.append(b1)
        b2_cols.append(b2)
        b3_cols.append(b3)

    W1 = jnp.concatenate(w1_cols, axis=1)                               # (din, wide)
    W2 = _block_diag([params[n][2] for n in order])                     # (wide, wide)
    W3 = _block_diag([params[n][4] for n in order])                     # (wide, 4H)
    W3 = jnp.pad(W3, ((0, 0), (0, wide - h4)))                          # (wide, wide)
    w_slab = jnp.concatenate([W1, W2, W3], axis=0).astype(jnp.bfloat16)

    B1 = jnp.concatenate(b1_cols, axis=1)                               # (1, wide)
    B2 = jnp.concatenate(b2_cols, axis=1)                               # (1, wide)
    B3 = jnp.pad(jnp.concatenate(b3_cols, axis=1), ((0, 0), (0, wide - h4)))
    b_slab = jnp.concatenate([B1, B2, B3], axis=0)                      # (3, wide)
    return w_slab, b_slab


# -----------------------------------------------------------------------------
# Pure-JAX reference (same bf16-operand / f32-accumulate matmul numerics)
# -----------------------------------------------------------------------------
def _reference_forward(params, x, x_p, act_emb, eps, train=True):
    def mm(a, w):
        return jnp.dot(a.astype(jnp.bfloat16), w.astype(jnp.bfloat16),
                       preferred_element_type=jnp.float32)

    def pff(p, inp):
        w1, b1, w2, b2, w3, b3 = p
        h = jnp.maximum(mm(inp, w1) + b1, 0.0)
        h = jnp.maximum(mm(h, w2) + b2, 0.0)
        return mm(h, w3) + b3

    mean = pff(params["mean"], x)
    log_var = pff(params["var"], x)
    cat = jnp.concatenate([x_p, x, act_emb], axis=-1)
    mean_p = pff(params["mean_p"], cat)
    log_var_p = pff(params["var_p"], cat)
    kld = -0.5 * jnp.sum(
        1.0 + (log_var_p - log_var)
        - (mean - mean_p) ** 2 / jnp.exp(log_var)
        - jnp.exp(log_var_p) / jnp.exp(log_var), axis=-1)
    kld = jnp.mean(kld)
    z = (eps * jnp.exp(0.5 * log_var_p) + mean_p) if train \
        else (eps * jnp.exp(0.5 * log_var) + mean)
    return kld, z


if __name__ == "__main__":
    # config.hidden_dim=32, config.filter=64, config.act_dim=16 (small synthetic).
    B, T, H, FILTER, ACT = 2, 8, 32, 64, 16

    key = jax.random.PRNGKey(0)
    k_x, k_xp, k_act, k_eps, k_m, k_v, k_mp, k_vp = jax.random.split(key, 8)

    x = jax.random.normal(k_x, (B, T, H), jnp.float32)
    x_p = jax.random.normal(k_xp, (B, T, H), jnp.float32)
    act_emb = jax.random.normal(k_act, (B, T, ACT), jnp.float32)
    # eps = torch.randn(x.size()) -> deterministic JAX equivalent passed in.
    eps = jax.random.normal(k_eps, (B, T, H), jnp.float32)

    params = {
        "mean":   init_pff_params(k_m,  H,           FILTER, H),
        "var":    init_pff_params(k_v,  H,           FILTER, H),
        "mean_p": init_pff_params(k_mp, 2 * H + ACT, FILTER, H),
        "var_p":  init_pff_params(k_vp, 2 * H + ACT, FILTER, H),
    }
    packed = jax.tree_util.tree_map(
        jax.block_until_ready, pack_act_latent_params(params, H, ACT, FILTER))

    fwd = jax.jit(functools.partial(act_latent_forward, train=True))
    kld_loss, z = fwd(packed, x, x_p, act_emb, eps)
    jax.block_until_ready((kld_loss, z))

    assert z.shape == (B, T, H) and kld_loss.shape == ()
    assert bool(jnp.isfinite(kld_loss)) and bool(jnp.all(jnp.isfinite(z)))

    # Correctness vs. the pure-JAX reference (packing + fusion must be exact
    # modulo bf16 matmul accumulation order).
    kld_ref, z_ref = _reference_forward(params, x, x_p, act_emb, eps, train=True)
    assert jnp.allclose(z, z_ref, atol=3e-2, rtol=3e-2), "z mismatch vs reference"
    assert abs(float(kld_loss) - float(kld_ref)) <= 3e-2 * (1.0 + abs(float(kld_ref))), \
        "kld mismatch vs reference"

    print("KERNEL_OK")
</pallas_src>

<mosaic_0001>
module attributes {stable_mosaic.version = 11 : i64} {
  func.func @_act_latent_kernel(%arg0: memref<16x112xf32, #tpu.memory_space<vmem>>, %arg1: memref<592x256xbf16, #tpu.memory_space<vmem>>, %arg2: memref<3x256xf32, #tpu.memory_space<vmem>>, %arg3: memref<16x32xf32, #tpu.memory_space<vmem>>, %arg4: memref<1x1xf32, #tpu.memory_space<vmem>>) attributes {dimension_semantics = [], scalar_prefetch = 0 : i64, scratch_operands = 0 : i64, tpu.core_type = #tpu.core_type<tc>} {
    %c0 = arith.constant 0 : index
    %c0_0 = arith.constant 0 : index
    %0 = vector.load %arg0[%c0, %c0_0] : memref<16x112xf32, #tpu.memory_space<vmem>>, vector<16x80xf32>
    %1 = arith.truncf %0 : vector<16x80xf32> to vector<16x80xbf16>
    %c0_1 = arith.constant 0 : index
    %c80 = arith.constant 80 : index
    %2 = vector.load %arg0[%c0_1, %c80] : memref<16x112xf32, #tpu.memory_space<vmem>>, vector<16x32xf32>
    %c0_2 = arith.constant 0 : index
    %c0_3 = arith.constant 0 : index
    %3 = vector.load %arg1[%c0_2, %c0_3] : memref<592x256xbf16, #tpu.memory_space<vmem>>, vector<80x256xbf16>
    %c80_4 = arith.constant 80 : index
    %c0_5 = arith.constant 0 : index
    %4 = vector.load %arg1[%c80_4, %c0_5] : memref<592x256xbf16, #tpu.memory_space<vmem>>, vector<256x256xbf16>
    %c336 = arith.constant 336 : index
    %c0_6 = arith.constant 0 : index
    %5 = vector.load %arg1[%c336, %c0_6] : memref<592x256xbf16, #tpu.memory_space<vmem>>, vector<256x128xbf16>
    %c0_7 = arith.constant 0 : index
    %c0_8 = arith.constant 0 : index
    %6 = vector.load %arg2[%c0_7, %c0_8] : memref<3x256xf32, #tpu.memory_space<vmem>>, vector<1x256xf32>
    %c1 = arith.constant 1 : index
    %c0_9 = arith.constant 0 : index
    %7 = vector.load %arg2[%c1, %c0_9] : memref<3x256xf32, #tpu.memory_space<vmem>>, vector<1x256xf32>
    %c2 = arith.constant 2 : index
    %c0_10 = arith.constant 0 : index
    %8 = vector.load %arg2[%c2, %c0_10] : memref<3x256xf32, #tpu.memory_space<vmem>>, vector<1x128xf32>
    %cst = arith.constant dense<0.000000e+00> : vector<16x256xf32>
    %9 = tpu.matmul %1, %3, %cst {dimension_numbers = #tpu.dot_dimension_numbers<[1], [0], [0], [1], [0, 0, 1, 1], [], []>} : vector<16x80xbf16>, vector<80x256xbf16>, vector<16x256xf32> -> vector<16x256xf32>
    %10 = vector.broadcast %6 : vector<1x256xf32> to vector<16x256xf32>
    %11 = arith.addf %9, %10 : vector<16x256xf32>
    %cst_11 = arith.constant 0.000000e+00 : f32
    %12 = vector.broadcast %cst_11 : f32 to vector<16x256xf32>
    %13 = arith.maximumf %11, %12 : vector<16x256xf32>
    %14 = arith.truncf %13 : vector<16x256xf32> to vector<16x256xbf16>
    %cst_12 = arith.constant dense<0.000000e+00> : vector<16x256xf32>
    %15 = tpu.matmul %14, %4, %cst_12 {dimension_numbers = #tpu.dot_dimension_numbers<[1], [0], [0], [1], [0, 0, 1, 1], [], []>} : vector<16x256xbf16>, vector<256x256xbf16>, vector<16x256xf32> -> vector<16x256xf32>
    %16 = vector.broadcast %7 : vector<1x256xf32> to vector<16x256xf32>
    %17 = arith.addf %15, %16 : vector<16x256xf32>
    %cst_13 = arith.constant 0.000000e+00 : f32
    %18 = vector.broadcast %cst_13 : f32 to vector<16x256xf32>
    %19 = arith.maximumf %17, %18 : vector<16x256xf32>
    %20 = arith.truncf %19 : vector<16x256xf32> to vector<16x256xbf16>
    %cst_14 = arith.constant dense<0.000000e+00> : vector<16x128xf32>
    %21 = tpu.matmul %20, %5, %cst_14 {dimension_numbers = #tpu.dot_dimension_numbers<[1], [0], [0], [1], [0, 0, 1, 1], [], []>} : vector<16x256xbf16>, vector<256x128xbf16>, vector<16x128xf32> -> vector<16x128xf32>
    %22 = vector.broadcast %8 : vector<1x128xf32> to vector<16x128xf32>
    %23 = arith.addf %21, %22 : vector<16x128xf32>
    %24 = vector.extract_strided_slice %23 {offsets = [0, 0], sizes = [16, 32], strides = [1, 1]} : vector<16x128xf32> to vector<16x32xf32>
    %25 = vector.extract_strided_slice %23 {offsets = [0, 32], sizes = [16, 32], strides = [1, 1]} : vector<16x128xf32> to vector<16x32xf32>
    %26 = vector.extract_strided_slice %23 {offsets = [0, 64], sizes = [16, 32], strides = [1, 1]} : vector<16x128xf32> to vector<16x32xf32>
    %27 = vector.extract_strided_slice %23 {offsets = [0, 96], sizes = [16, 32], strides = [1, 1]} : vector<16x128xf32> to vector<16x32xf32>
    %cst_15 = arith.constant 5.000000e-01 : f32
    %28 = vector.broadcast %cst_15 : f32 to vector<16x32xf32>
    %29 = arith.mulf %28, %27 : vector<16x32xf32>
    %30 = math.exp %29 : vector<16x32xf32>
    %31 = arith.mulf %2, %30 : vector<16x32xf32>
    %32 = arith.addf %31, %26 : vector<16x32xf32>
    %c0_16 = arith.constant 0 : index
    %c0_17 = arith.constant 0 : index
    %33 = vector.load %arg3[%c0_16, %c0_17] : memref<16x32xf32, #tpu.memory_space<vmem>>, vector<16x32xf32>
    tpu.vector_store %arg3[%c0_16, %c0_17], %32 {strides = array<i32>} : memref<16x32xf32, #tpu.memory_space<vmem>>, vector<16x32xf32>,
    %34 = arith.subf %27, %25 : vector<16x32xf32>
    %cst_18 = arith.constant 1.000000e+00 : f32
    %35 = vector.broadcast %cst_18 : f32 to vector<16x32xf32>
    %36 = arith.addf %35, %34 : vector<16x32xf32>
    %37 = arith.subf %24, %26 : vector<16x32xf32>
    %38 = arith.mulf %37, %37 : vector<16x32xf32>
    %cst_19 = arith.constant 0.000000e+00 : f32
    %39 = vector.broadcast %cst_19 : f32 to vector<16x32xf32>
    %40 = arith.subf %39, %25 : vector<16x32xf32>
    %41 = math.exp %40 : vector<16x32xf32>
    %42 = arith.mulf %38, %41 : vector<16x32xf32>
    %43 = arith.subf %36, %42 : vector<16x32xf32>
    %44 = math.exp %34 : vector<16x32xf32>
    %45 = arith.subf %43, %44 : vector<16x32xf32>
    %cst_20 = arith.constant dense<0.000000e+00> : vector<16xf32>
    %46 = vector.multi_reduction <add>, %45, %cst_20 [1] : vector<16x32xf32> to vector<16xf32>
    %47 = vector.shape_cast %46 : vector<16xf32> to vector<16x1xf32>
    %cst_21 = arith.constant dense<0.000000e+00> : vector<1xf32>
    %48 = vector.multi_reduction <add>, %47, %cst_21 [0] : vector<16x1xf32> to vector<1xf32>
    %49 = vector.shape_cast %48 : vector<1xf32> to vector<1x1xf32>
    %cst_22 = arith.constant -3.125000e-02 : f32
    %50 = vector.broadcast %cst_22 : f32 to vector<1x1xf32>
    %51 = arith.mulf %49, %50 : vector<1x1xf32>
    %c0_23 = arith.constant 0 : index
    %c0_24 = arith.constant 0 : index
    %52 = vector.load %arg4[%c0_23, %c0_24] : memref<1x1xf32, #tpu.memory_space<vmem>>, vector<1x1xf32>
    tpu.vector_store %arg4[%c0_23, %c0_24], %51 {strides = array<i32>} : memref<1x1xf32, #tpu.memory_space<vmem>>, vector<1x1xf32>,
    return
  }
}

</mosaic_0001>

<llo_original>
// kernel: act_latent_forward.1
$region0: #{act_latent_forward.1}
  #allocation0 [shape = 'u32[]', space=smem, size = 0x4, offset = 0x4, fixed_abs, tag = 'smem constant byte address 0x4 - core index']
  #allocation1 [shape = 'u32[72,128]{1,0:T(1,128)}', space=vmem, size = 0x9000, scoped, tag = 'internal scratch']
  %s0 = inlined_call_operand.vmem [shape: f32[16,112], index: 0, kind: input, shape index: {}]
  %s1 = inlined_call_operand.hbm [shape: bf16[592,256], index: 1, kind: input, shape index: {}]
  %s2 = inlined_call_operand.vmem [shape: f32[3,256], index: 2, kind: input, shape index: {}]
  %s3 = inlined_call_operand.hbm [shape: f32[16,32], index: 3, kind: output, shape index: {0}]
  %s4 = inlined_call_operand.hbm [shape: f32[1,1], index: 4, kind: output, shape index: {1}]
  %5 = xla_tuple %s3, %s4
  %s6 = sld [smem:[#allocation0]]
  $region34: #{act_latent_forward.1} parent=0
    _
  %s8 = ssub.s32 1, %s6
  %s9 = scalar_select 0, %s8, %s6
  $region1: #{act_latent_forward.1} parent=0
    #allocation2 [shape = 'u8[303104]{0}', space=vmem, size = 0x4a000, scoped, tag = 'input window, operand 1, single buffered']
    #allocation3 [shape = 's32[1]{0}', space=sflag, size = 0x4, scoped, tag = 'scoped memory for act_latent_forward.1']
    #allocation4 [shape = 's32[1]{0}', space=sflag, size = 0x4, scoped, tag = 'scoped memory for act_latent_forward.1']
    #allocation5 [shape = 'u8[8192]{0}', space=vmem, size = 0x2000, scoped, tag = 'output window, operand 0, single buffered']
    #allocation6 [shape = 'u8[512]{0}', space=vmem, size = 0x400, scoped, tag = 'output window, operand 1, single buffered']
    #allocation7 [shape = 's32[1]{0}', space=sflag, size = 0x4, scoped, tag = 'scoped memory for act_latent_forward.1']
    %10 = vsyncpa [#allocation3], 0
    %11 = vsyncpa [#allocation4], 0
    %12 = vsyncpa [#allocation7], 0
    // Predicated region
    $region2: #{act_latent_forward.1} parent=1 // pred_check
      _
    $region3: #{act_latent_forward.1} parent=1 // pred_check_branch
      %14 = sbr.rel (0) target = $region5
    $region4: #{act_latent_forward.1} parent=1 // pred_region
      _
    $region5: #{act_latent_forward.1} parent=1 // pred_fallthru
      _
    // Predicated region
    $region6: #{act_latent_forward.1} parent=1 // pred_check
      _
    $region7: #{act_latent_forward.1} parent=1 // pred_check_branch
      %16 = sbr.rel (0) target = $region9
    $region8: #{act_latent_forward.1} parent=1 // pred_region
      %18 = vsyncadd [#allocation3], 0
      %s19 = sshll.u32 %s1, 4
      %s20 = int_to_ptr.hbm [resolvable:$true] %s19
      %s21 = sshll.u32 [#allocation2], 4
      %s22 = int_to_ptr.vmem [resolvable:$true] %s21
      %27 = dma.hbm_to_vmem [thread:$0]  %s20, 9472, %s22, [#allocation3], 128, 128, 8
    $region9: #{act_latent_forward.1} parent=1 // pred_fallthru
      _
    // Predicated region
    $region10: #{act_latent_forward.1} parent=1 // pred_check
      _
    $region11: #{act_latent_forward.1} parent=1 // pred_check_branch
      %29 = sbr.rel (0) target = $region13
    $region12: #{act_latent_forward.1} parent=1 // pred_region
      _
    $region13: #{act_latent_forward.1} parent=1 // pred_fallthru
      _
    // Predicated region
    $region14: #{act_latent_forward.1} parent=1 // pred_check
      _
    $region15: #{act_latent_forward.1} parent=1 // pred_check_branch
      %31 = sbr.rel (0) target = $region17
    $region16: #{act_latent_forward.1} parent=1 // pred_region
      %33 = dma.done [#allocation3], 9472
    $region17: #{act_latent_forward.1} parent=1 // pred_fallthru
      _
    %v35 = vld [vmem:[%s0] sm:$0xff]
    %v36 = vld [vmem:[%s0 + $0x8] sm:$0xff]
    %v37 = vpack.c.bf16 %v36, %v35
    %v38 = vld [vmem:[#allocation2] sm:$0xff]
    %v39 = vld [vmem:[#allocation2 + $0x8] sm:$0xff]
    %v40 = vld [vmem:[#allocation2 + $0x10] sm:$0xff]
    %v41 = vld [vmem:[#allocation2 + $0x18] sm:$0xff]
    %v42 = vld [vmem:[#allocation2 + $0x20] sm:$0xff]
    %v43 = vld [vmem:[#allocation2 + $0x28] sm:$0xff]
    %v44 = vld [vmem:[#allocation2 + $0x30] sm:$0xff]
    %v45 = vld [vmem:[#allocation2 + $0x38] sm:$0xff]
    %v46 = vld [vmem:[#allocation2 + $0x40] sm:$0xff]
    %v47 = vld [vmem:[#allocation2 + $0x48] sm:$0xff]
    %v48 = vld [vmem:[#allocation2 + $0x50] sm:$0xff]
    %v49 = vld [vmem:[#allocation2 + $0x58] sm:$0xff]
    %v50 = vld [vmem:[#allocation2 + $0x60] sm:$0xff]
    %v51 = vld [vmem:[#allocation2 + $0x68] sm:$0xff]
    %v52 = vld [vmem:[#allocation2 + $0x70] sm:$0xff]
    %v53 = vld [vmem:[#allocation2 + $0x78] sm:$0xff]
    %v54 = vld [vmem:[#allocation2 + $0x80] sm:$0xff]
    %v55 = vld [vmem:[#allocation2 + $0x88] sm:$0xff]
    %v56 = vld [vmem:[#allocation2 + $0x90] sm:$0xff]
    %v57 = vld [vmem:[#allocation2 + $0x98] sm:$0xff]
    %v58 = vld [vmem:[#allocation2 + $0xa0] sm:$0xff]
    %v59 = vld [vmem:[#allocation2 + $0xa8] sm:$0xff]
    %v60 = vld [vmem:[#allocation2 + $0xb0] sm:$0xff]
    %v61 = vld [vmem:[#allocation2 + $0xb8] sm:$0xff]
    %v62 = vld [vmem:[#allocation2 + $0xc0] sm:$0xff]
    %v63 = vld [vmem:[#allocation2 + $0xc8] sm:$0xff]
    %v64 = vld [vmem:[#allocation2 + $0xd0] sm:$0xff]
    %v65 = vld [vmem:[#allocation2 + $0xd8] sm:$0xff]
    %v66 = vld [vmem:[#allocation2 + $0xe0] sm:$0xff]
    %v67 = vld [vmem:[#allocation2 + $0xe8] sm:$0xff]
    %v68 = vld [vmem:[#allocation2 + $0xf0] sm:$0xff]
    %v69 = vld [vmem:[#allocation2 + $0xf8] sm:$0xff]
    %v70 = vld [vmem:[#allocation2 + $0x100] sm:$0xff]
    %v71 = vld [vmem:[#allocation2 + $0x108] sm:$0xff]
    %v72 = vld [vmem:[#allocation2 + $0x110] sm:$0xff]
    %v73 = vld [vmem:[#allocation2 + $0x118] sm:$0xff]
    %v74 = vld [vmem:[#allocation2 + $0x120] sm:$0xff]
    %v75 = vld [vmem:[#allocation2 + $0x128] sm:$0xff]
    %v76 = vld [vmem:[#allocation2 + $0x130] sm:$0xff]
    %v77 = vld [vmem:[#allocation2 + $0x138] sm:$0xff]
    %v78 = vld [vmem:[#allocation2 + $0x140] sm:$0xff]
    %v79 = vld [vmem:[#allocation2 + $0x148] sm:$0xff]
    %v80 = vld [vmem:[#allocation2 + $0x150] sm:$0xf]
    %v81 = vld [vmem:[#allocation2 + $0x158] sm:$0xf]
    %v82 = vld [vmem:[#allocation2 + $0x160] sm:$0xf]
    %v83 = vld [vmem:[#allocation2 + $0x168] sm:$0xf]
    %v84 = vld [vmem:[#allocation2 + $0x170] sm:$0xf]
    %v85 = vld [vmem:[#allocation2 + $0x178] sm:$0xf]
    %v86 = vld [vmem:[#allocation2 + $0x180] sm:$0xf]
    %v87 = vld [vmem:[#allocation2 + $0x188] sm:$0xf]
    %v88 = vld [vmem:[#allocation2 + $0x190] sm:$0xf]
    %v89 = vld [vmem:[#allocation2 + $0x198] sm:$0xf]
    %v90 = vld [vmem:[#allocation2 + $0x1a0] sm:$0xf]
    %v91 = vld [vmem:[#allocation2 + $0x1a8] sm:$0xf]
    %v92 = vld [vmem:[#allocation2 + $0x1b0] sm:$0xf]
    %v93 = vld [vmem:[#allocation2 + $0x1b8] sm:$0xf]
    %v94 = vld [vmem:[#allocation2 + $0x1c0] sm:$0xf]
    %v95 = vld [vmem:[#allocation2 + $0x1c8] sm:$0xf]
    %v96 = vld [vmem:[#allocation2 + $0x1d0] sm:$0xf]
    %v97 = vld [vmem:[#allocation2 + $0x1d8] sm:$0xf]
    %v98 = vld [vmem:[#allocation2 + $0x1e0] sm:$0xf]
    %v99 = vld [vmem:[#allocation2 + $0x1e8] sm:$0xf]
    %v100 = vld [vmem:[#allocation2 + $0x1f0] sm:$0xf]
    %v101 = vld [vmem:[#allocation2 + $0x1f8] sm:$0xf]
    %v102 = vld [vmem:[#allocation2 + $0x200] sm:$0xf]
    %v103 = vld [vmem:[#allocation2 + $0x208] sm:$0xf]
    %v104 = vld [vmem:[#allocation2 + $0x210] sm:$0xf]
    %v105 = vld [vmem:[#allocation2 + $0x218] sm:$0xf]
    %v106 = vld [vmem:[#allocation2 + $0x220] sm:$0xf]
    %v107 = vld [vmem:[#allocation2 + $0x228] sm:$0xf]
    %v108 = vld [vmem:[#allocation2 + $0x230] sm:$0xf]
    %v109 = vld [vmem:[#allocation2 + $0x238] sm:$0xf]
    %v110 = vld [vmem:[#allocation2 + $0x240] sm:$0xf]
    %v111 = vld [vmem:[#allocation2 + $0x248] sm:$0xf]
    %v112 = vld [vmem:[%s2] ss:$4 sm:$0x3]
    %s113 = scalar_lea.vmem %s2, 1
    %v114 = vld [vmem:[%s113] ss:$4 sm:$0x3]
    %v115 = vld [vmem:[%s2 + $0x2] sm:$0x1]
    %v117 = vperm.slane %v112, 0
    %v118 = vperm.slane %v112, 1
    %v131 = vunpack.c.l.b16 %v38
    %v132 = vunpack.c.h.b16 %v38
    %v133 = vunpack.c.l.b16 %v39
    %v134 = vunpack.c.h.b16 %v39
    %v135 = vunpack.c.l.b16 %v40
    %v136 = vunpack.c.h.b16 %v40
    %v137 = vunpack.c.l.b16 %v41
    %v138 = vunpack.c.h.b16 %v41
    %v139 = vunpack.c.l.b16 %v42
    %v140 = vunpack.c.h.b16 %v42
    %v141 = vunpack.c.l.b16 %v43
    %v142 = vunpack.c.h.b16 %v43
    %v143 = vunpack.c.l.b16 %v44
    %v144 = vunpack.c.h.b16 %v44
    %v145 = vunpack.c.l.b16 %v45
    %v146 = vunpack.c.h.b16 %v45
    %v147 = vunpack.c.l.b16 %v46
    %v148 = vunpack.c.h.b16 %v46
    %v149 = vunpack.c.l.b16 %v47
    %v150 = vunpack.c.h.b16 %v47
    %v151 = vpack.c.b16 %v133, %v131
    %v152 = vpack.c.b16 %v134, %v132
    %v153 = vpack.c.b16 %v137, %v135
    %v154 = vpack.c.b16 %v138, %v136
    %v155 = vpack.c.b16 %v141, %v139
    %v156 = vpack.c.b16 %v142, %v140
    %v157 = vpack.c.b16 %v145, %v143
    %v158 = vpack.c.b16 %v146, %v144
    %v159 = vpack.c.b16 %v149, %v147
    %v160 = vpack.c.b16 %v150, %v148
    %vm171 = vcmask 654336
    %v173 = vsel %vm171, %v37, 0
    %175 = vmatpush.bf16.msra.mxu0 0
    %176 = vmatpush.bf16.msra.mxu0 0
    %177 = vmatpush.bf16.msra.mxu0 0
    %178 = vmatpush.bf16.msra.mxu0 %v159
    %179 = vmatpush.bf16.msra.mxu0 %v157
    %180 = vmatpush.bf16.msra.mxu0 %v155
    %181 = vmatpush.bf16.msra.mxu0 %v153
    %182 = vmatpush.bf16.msra.mxu0 %v151
    %183 = vmatmul.bf16.gmra.mxu0 %v173
    %v184 = vpop.f32.mrf.mxu0
    %v185 = vadd.f32 %v117, %v184
    %v186 = vpop.f32.mrf.mxu0
    %v187 = vadd.f32 %v117, %v186
    %188 = vdwg.mxu0
    %189 = vmatpush.bf16.msra.mxu0 0
    %190 = vmatpush.bf16.msra.mxu0 0
    %191 = vmatpush.bf16.msra.mxu0 0
    %192 = vmatpush.bf16.msra.mxu0 %v160
    %193 = vmatpush.bf16.msra.mxu0 %v158
    %194 = vmatpush.bf16.msra.mxu0 %v156
    %195 = vmatpush.bf16.msra.mxu0 %v154
    %196 = vmatpush.bf16.msra.mxu0 %v152
    %197 = vmatmul.bf16.gmra.mxu0 %v173
    %v198 = vpop.f32.mrf.mxu0
    %v199 = vadd.f32 %v118, %v198
    %v200 = vpop.f32.mrf.mxu0
    %v201 = vadd.f32 %v118, %v200
    %202 = vdwg.mxu0
    %v203 = vmax.f32 %v185, 0.0
    %v204 = vmax.f32 %v199, 0.0
    %v205 = vmax.f32 %v187, 0.0
    %v206 = vmax.f32 %v201, 0.0
    %v207 = vpack.c.bf16 %v205, %v203
    %v208 = vpack.c.bf16 %v206, %v204
    %v210 = vperm.slane %v114, 0
    %v211 = vperm.slane %v114, 1
    %v246 = vunpack.c.l.b16 %v48
    %v247 = vunpack.c.h.b16 %v48
    %v248 = vunpack.c.l.b16 %v49
    %v249 = vunpack.c.h.b16 %v49
    %v250 = vunpack.c.l.b16 %v50
    %v251 = vunpack.c.h.b16 %v50
    %v252 = vunpack.c.l.b16 %v51
    %v253 = vunpack.c.h.b16 %v51
    %v254 = vunpack.c.l.b16 %v52
    %v255 = vunpack.c.h.b16 %v52
    %v256 = vunpack.c.l.b16 %v53
    %v257 = vunpack.c.h.b16 %v53
    %v258 = vunpack.c.l.b16 %v54
    %v259 = vunpack.c.h.b16 %v54
    %v260 = vunpack.c.l.b16 %v55
    %v261 = vunpack.c.h.b16 %v55
    %v262 = vunpack.c.l.b16 %v56
    %v263 = vunpack.c.h.b16 %v56
    %v264 = vunpack.c.l.b16 %v57
    %v265 = vunpack.c.h.b16 %v57
    %v266 = vunpack.c.l.b16 %v58
    %v267 = vunpack.c.h.b16 %v58
    %v268 = vunpack.c.l.b16 %v59
    %v269 = vunpack.c.h.b16 %v59
    %v270 = vunpack.c.l.b16 %v60
    %v271 = vunpack.c.h.b16 %v60
    %v272 = vunpack.c.l.b16 %v61
    %v273 = vunpack.c.h.b16 %v61
    %v274 = vunpack.c.l.b16 %v62
    %v275 = vunpack.c.h.b16 %v62
    %v276 = vunpack.c.l.b16 %v63
    %v277 = vunpack.c.h.b16 %v63
    %v278 = vunpack.c.l.b16 %v64
    %v279 = vunpack.c.h.b16 %v64
    %v280 = vunpack.c.l.b16 %v65
    %v281 = vunpack.c.h.b16 %v65
    %v282 = vunpack.c.l.b16 %v66
    %v283 = vunpack.c.h.b16 %v66
    %v284 = vunpack.c.l.b16 %v67
    %v285 = vunpack.c.h.b16 %v67
    %v286 = vunpack.c.l.b16 %v68
    %v287 = vunpack.c.h.b16 %v68
    %v288 = vunpack.c.l.b16 %v69
    %v289 = vunpack.c.h.b16 %v69
    %v290 = vunpack.c.l.b16 %v70
    %v291 = vunpack.c.h.b16 %v70
    %v292 = vunpack.c.l.b16 %v71
    %v293 = vunpack.c.h.b16 %v71
    %v294 = vunpack.c.l.b16 %v72
    %v295 = vunpack.c.h.b16 %v72
    %v296 = vunpack.c.l.b16 %v73
    %v297 = vunpack.c.h.b16 %v73
    %v298 = vunpack.c.l.b16 %v74
    %v299 = vunpack.c.h.b16 %v74
    %v300 = vunpack.c.l.b16 %v75
    %v301 = vunpack.c.h.b16 %v75
    %v302 = vunpack.c.l.b16 %v76
    %v303 = vunpack.c.h.b16 %v76
    %v304 = vunpack.c.l.b16 %v77
    %v305 = vunpack.c.h.b16 %v77
    %v306 = vunpack.c.l.b16 %v78
    %v307 = vunpack.c.h.b16 %v78
    %v308 = vunpack.c.l.b16 %v79
    %v309 = vunpack.c.h.b16 %v79
    %v310 = vpack.c.b16 %v248, %v246
    %v311 = vpack.c.b16 %v249, %v247
    %v312 = vpack.c.b16 %v252, %v250
    %v313 = vpack.c.b16 %v253, %v251
    %v314 = vpack.c.b16 %v256, %v254
    %v315 = vpack.c.b16 %v257, %v255
    %v316 = vpack.c.b16 %v260, %v258
    %v317 = vpack.c.b16 %v261, %v259
    %v318 = vpack.c.b16 %v264, %v262
    %v319 = vpack.c.b16 %v265, %v263
    %v320 = vpack.c.b16 %v268, %v266
    %v321 = vpack.c.b16 %v269, %v267
    %v322 = vpack.c.b16 %v272, %v270
    %v323 = vpack.c.b16 %v273, %v271
    %v324 = vpack.c.b16 %v276, %v274
    %v325 = vpack.c.b16 %v277, %v275
    %v326 = vpack.c.b16 %v280, %v278
    %v327 = vpack.c.b16 %v281, %v279
    %v328 = vpack.c.b16 %v284, %v282
    %v329 = vpack.c.b16 %v285, %v283
    %v330 = vpack.c.b16 %v288, %v286
    %v331 = vpack.c.b16 %v289, %v287
    %v332 = vpack.c.b16 %v292, %v290
    %v333 = vpack.c.b16 %v293, %v291
    %v334 = vpack.c.b16 %v296, %v294
    %v335 = vpack.c.b16 %v297, %v295
    %v336 = vpack.c.b16 %v300, %v298
    %v337 = vpack.c.b16 %v301, %v299
    %v338 = vpack.c.b16 %v304, %v302
    %v339 = vpack.c.b16 %v305, %v303
    %v340 = vpack.c.b16 %v308, %v306
    %v341 = vpack.c.b16 %v309, %v307
    %374 = vmatpush.bf16.msra.mxu0 %v324
    %375 = vmatpush.bf16.msra.mxu0 %v322
    %376 = vmatpush.bf16.msra.mxu0 %v320
    %377 = vmatpush.bf16.msra.mxu0 %v318
    %378 = vmatpush.bf16.msra.mxu0 %v316
    %379 = vmatpush.bf16.msra.mxu0 %v314
    %380 = vmatpush.bf16.msra.mxu0 %v312
    %381 = vmatpush.bf16.msra.mxu0 %v310
    %382 = vmatmul.bf16.gmra.mxu0 %v207
    %v383 = vpop.f32.mrf.mxu0
    %v384 = vadd.f32 %v210, %v383
    %v385 = vpop.f32.mrf.mxu0
    %v386 = vadd.f32 %v210, %v385
    %387 = vdwg.mxu0
    %388 = vmatpush.bf16.msra.mxu0 %v340
    %389 = vmatpush.bf16.msra.mxu0 %v338
    %390 = vmatpush.bf16.msra.mxu0 %v336
    %391 = vmatpush.bf16.msra.mxu0 %v334
    %392 = vmatpush.bf16.msra.mxu0 %v332
    %393 = vmatpush.bf16.msra.mxu0 %v330
    %394 = vmatpush.bf16.msra.mxu0 %v328
    %395 = vmatpush.bf16.msra.mxu0 %v326
    %396 = vmatmul.bf16.gmra.mxu0 %v208
    %v397 = vpop.f32.mrf.mxu0
    %v398 = vadd.f32 %v384, %v397
    %v399 = vpop.f32.mrf.mxu0
    %v400 = vadd.f32 %v386, %v399
    %401 = vdwg.mxu0
    %402 = vmatpush.bf16.msra.mxu0 %v325
    %403 = vmatpush.bf16.msra.mxu0 %v323
    %404 = vmatpush.bf16.msra.mxu0 %v321
    %405 = vmatpush.bf16.msra.mxu0 %v319
    %406 = vmatpush.bf16.msra.mxu0 %v317
    %407 = vmatpush.bf16.msra.mxu0 %v315
    %408 = vmatpush.bf16.msra.mxu0 %v313
    %409 = vmatpush.bf16.msra.mxu0 %v311
    %410 = vmatmul.bf16.gmra.mxu0 %v207
    %v411 = vpop.f32.mrf.mxu0
    %v412 = vadd.f32 %v211, %v411
    %v413 = vpop.f32.mrf.mxu0
    %v414 = vadd.f32 %v211, %v413
    %415 = vdwg.mxu0
    %416 = vmatpush.bf16.msra.mxu0 %v341
    %417 = vmatpush.bf16.msra.mxu0 %v339
    %418 = vmatpush.bf16.msra.mxu0 %v337
    %419 = vmatpush.bf16.msra.mxu0 %v335
    %420 = vmatpush.bf16.msra.mxu0 %v333
    %421 = vmatpush.bf16.msra.mxu0 %v331
    %422 = vmatpush.bf16.msra.mxu0 %v329
    %423 = vmatpush.bf16.msra.mxu0 %v327
    %424 = vmatmul.bf16.gmra.mxu0 %v208
    %v425 = vpop.f32.mrf.mxu0
    %v426 = vadd.f32 %v412, %v425
    %v427 = vpop.f32.mrf.mxu0
    %v428 = vadd.f32 %v414, %v427
    %429 = vdwg.mxu0
    %v430 = vmax.f32 %v398, 0.0
    %v431 = vmax.f32 %v426, 0.0
    %v432 = vmax.f32 %v400, 0.0
    %v433 = vmax.f32 %v428, 0.0
    %v434 = vpack.c.bf16 %v432, %v430
    %v435 = vpack.c.bf16 %v433, %v431
    %v436 = vperm.slane %v115, 0
    %v469 = vunpack.c.l.b16 %v80
    %v470 = vunpack.c.l.b16 %v81
    %v471 = vunpack.c.l.b16 %v82
    %v472 = vunpack.c.l.b16 %v83
    %v473 = vunpack.c.l.b16 %v84
    %v474 = vunpack.c.l.b16 %v85
    %v475 = vunpack.c.l.b16 %v86
    %v476 = vunpack.c.l.b16 %v87
    %v477 = vunpack.c.l.b16 %v88
    %v478 = vunpack.c.l.b16 %v89
    %v479 = vunpack.c.l.b16 %v90
    %v480 = vunpack.c.l.b16 %v91
    %v481 = vunpack.c.l.b16 %v92
    %v482 = vunpack.c.l.b16 %v93
    %v483 = vunpack.c.l.b16 %v94
    %v484 = vunpack.c.l.b16 %v95
    %v485 = vunpack.c.l.b16 %v96
    %v486 = vunpack.c.l.b16 %v97
    %v487 = vunpack.c.l.b16 %v98
    %v488 = vunpack.c.l.b16 %v99
    %v489 = vunpack.c.l.b16 %v100
    %v490 = vunpack.c.l.b16 %v101
    %v491 = vunpack.c.l.b16 %v102
    %v492 = vunpack.c.l.b16 %v103
    %v493 = vunpack.c.l.b16 %v104
    %v494 = vunpack.c.l.b16 %v105
    %v495 = vunpack.c.l.b16 %v106
    %v496 = vunpack.c.l.b16 %v107
    %v497 = vunpack.c.l.b16 %v108
    %v498 = vunpack.c.l.b16 %v109
    %v499 = vunpack.c.l.b16 %v110
    %v500 = vunpack.c.l.b16 %v111
    %v501 = vpack.c.b16 %v470, %v469
    %v502 = vpack.c.b16 %v472, %v471
    %v503 = vpack.c.b16 %v474, %v473
    %v504 = vpack.c.b16 %v476, %v475
    %v505 = vpack.c.b16 %v478, %v477
    %v506 = vpack.c.b16 %v480, %v479
    %v507 = vpack.c.b16 %v482, %v481
    %v508 = vpack.c.b16 %v484, %v483
    %v509 = vpack.c.b16 %v486, %v485
    %v510 = vpack.c.b16 %v488, %v487
    %v511 = vpack.c.b16 %v490, %v489
    %v512 = vpack.c.b16 %v492, %v491
    %v513 = vpack.c.b16 %v494, %v493
    %v514 = vpack.c.b16 %v496, %v495
    %v515 = vpack.c.b16 %v498, %v497
    %v516 = vpack.c.b16 %v500, %v499
    %533 = vmatpush.bf16.msra.mxu0 %v508
    %534 = vmatpush.bf16.msra.mxu0 %v507
    %535 = vmatpush.bf16.msra.mxu0 %v506
    %536 = vmatpush.bf16.msra.mxu0 %v505
    %537 = vmatpush.bf16.msra.mxu0 %v504
    %538 = vmatpush.bf16.msra.mxu0 %v503
    %539 = vmatpush.bf16.msra.mxu0 %v502
    %540 = vmatpush.bf16.msra.mxu0 %v501
    %541 = vmatmul.bf16.gmra.mxu0 %v434
    %v542 = vpop.f32.mrf.mxu0
    %v543 = vadd.f32 %v436, %v542
    %v544 = vpop.f32.mrf.mxu0
    %v545 = vadd.f32 %v436, %v544
    %546 = vdwg.mxu0
    %547 = vmatpush.bf16.msra.mxu0 %v516
    %548 = vmatpush.bf16.msra.mxu0 %v515
    %549 = vmatpush.bf16.msra.mxu0 %v514
    %550 = vmatpush.bf16.msra.mxu0 %v513
    %551 = vmatpush.bf16.msra.mxu0 %v512
    %552 = vmatpush.bf16.msra.mxu0 %v511
    %553 = vmatpush.bf16.msra.mxu0 %v510
    %554 = vmatpush.bf16.msra.mxu0 %v509
    %555 = vmatmul.bf16.gmra.mxu0 %v435
    %v556 = vpop.f32.mrf.mxu0
    %v557 = vadd.f32 %v543, %v556
    %v558 = vpop.f32.mrf.mxu0
    %v559 = vadd.f32 %v545, %v558
    %560 = vdwg.mxu0
    %v561 = vmul.f32 %v557, 0.5
    %v562 = vmul.f32 %v559, 0.5
    %v563 = vmul.f32 %v561, 1.442695
    %v564 = vpow.pop %v563
    %v565 = vmul.f32 %v562, 1.442695
    %v566 = vpow.pop %v565
    %569 = vrot.lane.b32.xlu0 %v564, 112
    %v570 = vpop.permute.xlu0 %569
    %571 = vrot.lane.b32.xlu0 %v566, 112
    %v572 = vpop.permute.xlu0 %571
    %v575 = vmul.f32 %v35, %v570
    %v576 = vmul.f32 %v36, %v572
    %579 = vrot.lane.b32.xlu0 %v557, 16
    %v580 = vpop.permute.xlu0 %579
    %581 = vrot.lane.b32.xlu0 %v559, 16
    %v582 = vpop.permute.xlu0 %581
    %v585 = vadd.f32 %v575, %v580
    %v586 = vadd.f32 %v576, %v582
    %589 = vrot.lane.b32.xlu0 %v585, 48
    %v590 = vpop.permute.xlu0 %589
    %591 = vrot.lane.b32.xlu0 %v586, 48
    %v592 = vpop.permute.xlu0 %591
    %vm595 = vcmask 261120
    %596 = vst.msk [vmem:[#allocation5] sm:$0xff] %vm595, %v590
    %597 = vst.msk [vmem:[#allocation5 + $0x8] sm:$0xff] %vm595, %v592
    %598 = vrot.lane.b32.xlu0 %v557, 64
    %v599 = vpop.permute.xlu0 %598
    %600 = vrot.lane.b32.xlu0 %v559, 64
    %v601 = vpop.permute.xlu0 %600
    %v604 = vsub.f32 %v557, %v599
    %v605 = vsub.f32 %v559, %v601
    %v606 = vadd.f32 %v604, 1.0
    %v607 = vadd.f32 %v605, 1.0
    %v608 = vmul.f32 %v604, %v604
    %v609 = vmul.f32 %v605, %v605
    %v610 = vsub.f32 0.0, %v557
    %v611 = vsub.f32 0.0, %v559
    %v612 = vmul.f32 %v610, 1.442695
    %v613 = vpow.pop %v612
    %v614 = vmul.f32 %v611, 1.442695
    %v615 = vpow.pop %v614
    %618 = vrot.lane.b32.xlu0 %v613, 96
    %v619 = vpop.permute.xlu0 %618
    %620 = vrot.lane.b32.xlu0 %v615, 96
    %v621 = vpop.permute.xlu0 %620
    %v624 = vmul.f32 %v608, %v619
    %v625 = vmul.f32 %v609, %v621
    %628 = vrot.lane.b32.xlu0 %v624, 96
    %v629 = vpop.permute.xlu0 %628
    %630 = vrot.lane.b32.xlu0 %v625, 96
    %v631 = vpop.permute.xlu0 %630
    %v634 = vsub.f32 %v606, %v629
    %v635 = vsub.f32 %v607, %v631
    %v636 = vmul.f32 %v604, 1.442695
    %v637 = vpow.pop %v636
    %v638 = vmul.f32 %v605, 1.442695
    %v639 = vpow.pop %v638
    %v640 = vsub.f32 %v634, %v637
    %v641 = vsub.f32 %v635, %v639
    %644 = vrot.lane.b32.xlu0 %v640, 32
    %v645 = vpop.permute.xlu0 %644
    %646 = vrot.lane.b32.xlu0 %v641, 32
    %v647 = vpop.permute.xlu0 %646
    %v650 = vsel %vm595, %v645, 0.0
    %651 = vadd.xlane.f32.xlu0 %v650
    %v652 = vpop.xlane.xlu0 %651
    %v653 = vsel %vm595, %v647, 0.0
    %654 = vadd.xlane.f32.xlu0 %v653
    %v655 = vpop.xlane.xlu0 %654
    %v656 = vadd.f32 %v652, %v655
    %v657 = vrot.slane %v656, 4
    %v658 = vadd.f32 %v656, %v657
    %v659 = vrot.slane %v658, 2
    %v660 = vadd.f32 %v658, %v659
    %v661 = vrot.slane %v660, 1
    %v662 = vadd.f32 %v660, %v661
    %v663 = vmul.f32 %v662, -0.03125
    %vm664 = vcmask 0
    %665 = vst.msk [vmem:[#allocation6] sm:$0x1] %vm664, %v663
    // Predicated region
    $region18: #{act_latent_forward.1} parent=1 // pred_check
      _
    $region19: #{act_latent_forward.1} parent=1 // pred_check_branch
      %667 = sbr.rel (0) target = $region21
    $region20: #{act_latent_forward.1} parent=1 // pred_region
      %669 = vsyncadd [#allocation4], 0
      %s670 = sshll.u32 [#allocation5], 4
      %s671 = int_to_ptr.vmem [resolvable:$true] %s670
      %s672 = sshll.u32 %s3, 4
      %s673 = int_to_ptr.hbm [resolvable:$true] %s672
      %678 = dma.vmem_to_hbm [thread:$0]  %s671, 256, %s673, [#allocation4], 128, 128, 8
    $region21: #{act_latent_forward.1} parent=1 // pred_fallthru
      _
    // Predicated region
    $region22: #{act_latent_forward.1} parent=1 // pred_check
      _
    $region23: #{act_latent_forward.1} parent=1 // pred_check_branch
      %680 = sbr.rel (0) target = $region25
    $region24: #{act_latent_forward.1} parent=1 // pred_region
      %682 = vsyncadd [#allocation7], 0
      %s684 = sshll.u32 [#allocation6], 4
      %s685 = int_to_ptr.vmem [resolvable:$true] %s684
      %s686 = sshll.u32 %s4, 4
      %s687 = int_to_ptr.hbm [resolvable:$true] %s686
      %689 = dma.vmem_to_hbm [thread:$0]  %s685, 16, %s687, [#allocation7]
    $region25: #{act_latent_forward.1} parent=1 // pred_fallthru
      _
    // Predicated region
    $region26: #{act_latent_forward.1} parent=1 // pred_check
      _
    $region27: #{act_latent_forward.1} parent=1 // pred_check_branch
      %691 = sbr.rel (0) target = $region29
    $region28: #{act_latent_forward.1} parent=1 // pred_region
      %693 = dma.done [#allocation4], 256
    $region29: #{act_latent_forward.1} parent=1 // pred_fallthru
      _
    // Predicated region
    $region30: #{act_latent_forward.1} parent=1 // pred_check
      _
    $region31: #{act_latent_forward.1} parent=1 // pred_check_branch
      %695 = sbr.rel (0) target = $region33
    $region32: #{act_latent_forward.1} parent=1 // pred_region
      %697 = dma.done [#allocation7], 16
    $region33: #{act_latent_forward.1} parent=1 // pred_fallthru
      _
    %698 = vsyncpa [#allocation3], 1
    %699 = vsyncpa [#allocation4], 1
    %700 = vsyncpa [#allocation7], 1

</llo_original>
